<compile_context>
chip_gen: v7x
topology: tpu7x:2x2x1
jax: 0.10.0
libtpu: 0.0.40
codegen_flags: <defaults>
</compile_context>

<pallas_src>
import functools

import jax
import jax.numpy as jnp
from jax.experimental import pallas as pl
from jax.experimental.pallas import tpu as pltpu

_NEG_INF = -1e30  # large finite negative: avoids inf-inf NaNs if ever generalized
_VMEM_LIMIT = 32 * 1024 * 1024  # > v5e's 16 MiB default, within v7x's 64 MiB physical


def _pick_tile(n, candidates):
    """Largest candidate tile that evenly divides n, else n itself (single block)."""
    for c in candidates:
        if c <= n and n % c == 0:
            return c
    return n


# ----------------------------------------------------------------------------
# Kernel 1: fused QKV projection  (B*T, C) @ (C, 3H) -> q, k, v  (each (B*T, H))
# ----------------------------------------------------------------------------
def _qkv_proj_kernel(x_ref, w_ref, q_ref, k_ref, v_ref):
    x = x_ref[...]                      # (bm, C)  compute dtype
    w = w_ref[...]                      # (C, 3H)  compute dtype
    qkv = jnp.dot(x, w, preferred_element_type=jnp.float32)   # (bm, 3H) f32
    H = q_ref.shape[-1]
    q_ref[...] = qkv[:, 0 * H:1 * H].astype(q_ref.dtype)
    k_ref[...] = qkv[:, 1 * H:2 * H].astype(k_ref.dtype)
    v_ref[...] = qkv[:, 2 * H:3 * H].astype(v_ref.dtype)


def _qkv_project(x, w_qkv, compute_dtype):
    B, T, C = x.shape
    H3 = w_qkv.shape[1]
    H = H3 // 3
    M = B * T

    xm = x.reshape(M, C).astype(compute_dtype)
    w = w_qkv.astype(compute_dtype)

    bm = _pick_tile(M, (512, 256, 128))
    grid = (M // bm,)

    q, k, v = pl.pallas_call(
        _qkv_proj_kernel,
        out_shape=tuple(jax.ShapeDtypeStruct((M, H), compute_dtype) for _ in range(3)),
        grid_spec=pltpu.PrefetchScalarGridSpec(
            num_scalar_prefetch=0,
            grid=grid,
            in_specs=[
                pl.BlockSpec((bm, C), lambda i: (i, 0)),
                pl.BlockSpec((C, H3), lambda i: (0, 0)),   # weights resident
            ],
            out_specs=tuple(pl.BlockSpec((bm, H), lambda i: (i, 0)) for _ in range(3)),
        ),
        compiler_params=pltpu.CompilerParams(
            dimension_semantics=("parallel",),
            vmem_limit_bytes=_VMEM_LIMIT,
        ),
    )(xm, w)

    return q.reshape(B, T, H), k.reshape(B, T, H), v.reshape(B, T, H)


# ----------------------------------------------------------------------------
# Kernel 2: flash-style causal attention with online softmax
# ----------------------------------------------------------------------------
def _flash_attn_kernel(q_ref, k_ref, v_ref, o_ref, m_sc, l_sc, acc_sc, *, scale):
    qi = pl.program_id(1)
    ki = pl.program_id(2)
    tq = q_ref.shape[1]
    tk = k_ref.shape[1]

    @pl.when(ki == 0)
    def _init():
        m_sc[...] = jnp.full_like(m_sc, _NEG_INF)
        l_sc[...] = jnp.zeros_like(l_sc)
        acc_sc[...] = jnp.zeros_like(acc_sc)

    # Causal block skipping: with tq == tk, blocks with ki > qi are fully masked.
    @pl.when(ki <= qi)
    def _compute():
        q = q_ref[0]                    # (tq, H) compute dtype
        k = k_ref[0]                    # (tk, H)
        v = v_ref[0]                    # (tk, H)

        # q @ k^T without materializing a transpose: contract dim 1 of both.
        s = jax.lax.dot_general(
            q, k, (((1,), (1,)), ((), ())),
            preferred_element_type=jnp.float32,
        ) * jnp.float32(scale)          # (tq, tk) f32

        # Causal mask (only has an effect on the diagonal block when tq == tk).
        row = qi * tq + jax.lax.broadcasted_iota(jnp.int32, (tq, tk), 0)
        col = ki * tk + jax.lax.broadcasted_iota(jnp.int32, (tq, tk), 1)
        s = jnp.where(col <= row, s, _NEG_INF)

        m_prev = m_sc[...]                                          # (tq, 1)
        m_new = jnp.maximum(m_prev, jnp.max(s, axis=-1, keepdims=True))
        alpha = jnp.exp(m_prev - m_new)                             # f32
        p = jnp.exp(s - m_new)                                      # f32

        l_sc[...] = alpha * l_sc[...] + jnp.sum(p, axis=-1, keepdims=True)
        acc_sc[...] = alpha * acc_sc[...] + jnp.dot(
            p.astype(v.dtype), v, preferred_element_type=jnp.float32)
        m_sc[...] = m_new

    # Last contributing KV block for this q block: normalize and store.
    @pl.when(ki == qi)
    def _finalize():
        inv_l = pl.reciprocal(l_sc[...], approx=True)               # EUP slot
        o_ref[0] = (acc_sc[...] * inv_l).astype(o_ref.dtype)


def _flash_attention(q, k, v, *, scale, out_dtype):
    B, T, H = q.shape
    # Tile budget: 128/256 keeps footprint O(tq*tk + tq*H) well inside the
    # 32 MiB scoped VMEM limit on all generations (incl. v7x's 64 MiB physical).
    tq = _pick_tile(T, (256, 128))
    tk = tq
    nq = T // tq
    nk = T // tk

    kernel = functools.partial(_flash_attn_kernel, scale=float(scale))

    return pl.pallas_call(
        kernel,
        out_shape=jax.ShapeDtypeStruct((B, T, H), out_dtype),
        grid_spec=pltpu.PrefetchScalarGridSpec(
            num_scalar_prefetch=0,
            grid=(B, nq, nk),
            in_specs=[
                pl.BlockSpec((1, tq, H), lambda b, qi, ki: (b, qi, 0)),
                pl.BlockSpec((1, tk, H), lambda b, qi, ki: (b, ki, 0)),
                pl.BlockSpec((1, tk, H), lambda b, qi, ki: (b, ki, 0)),
            ],
            out_specs=pl.BlockSpec((1, tq, H), lambda b, qi, ki: (b, qi, 0)),
            scratch_shapes=[
                pltpu.VMEM((tq, 1), jnp.float32),   # m (running max)
                pltpu.VMEM((tq, 1), jnp.float32),   # l (running denom)
                pltpu.VMEM((tq, H), jnp.float32),   # acc
            ],
        ),
        compiler_params=pltpu.CompilerParams(
            # Leading parallel axes let v7x shard (B, q-block) across its 2 TCs.
            dimension_semantics=("parallel", "parallel", "arbitrary"),
            vmem_limit_bytes=_VMEM_LIMIT,
        ),
    )(q, k, v)


# ----------------------------------------------------------------------------
# Public wrapper
# ----------------------------------------------------------------------------
def self_attention_head(x, w_qkv, *, compute_dtype=jnp.bfloat16):
    """Causal single-head attention.

    x:      (B, T, C) float32
    w_qkv:  (C, 3*H)  float32 -- concat of [Wq^T | Wk^T | Wv^T] (transposed
            PyTorch Linear weights), so the kernel computes x @ W directly.
    compute_dtype: dtype of MXU operands (bf16 default; accumulation and all
            softmax math stay f32).
    """
    B, T, C = x.shape
    q, k, v = _qkv_project(x, w_qkv, compute_dtype)
    # Module scales by n_embd (C) ** -0.5, not head_size ** -0.5 — kept as-is.
    return _flash_attention(q, k, v, scale=C ** (-0.5), out_dtype=x.dtype)


def _reference(x, wq, wk, wv):
    """Pure-JAX f32 reference mirroring the PyTorch forward."""
    B, T, C = x.shape
    q = x @ wq
    k = x @ wk
    v = x @ wv
    att = (q @ jnp.swapaxes(k, -2, -1)) * (C ** -0.5)
    mask = jnp.tril(jnp.ones((T, T), dtype=bool))
    att = jnp.where(mask, att, -jnp.inf)
    att = jax.nn.softmax(att, axis=-1)
    return att @ v


if __name__ == "__main__":
    # Small shapes consistent with the module:
    # batch=2, seq (context_length)=8, n_embd=32, head_size=16
    B, T, C, H = 2, 8, 32, 16
    key = jax.random.PRNGKey(0)
    kx, kq, kk, kv = jax.random.split(key, 4)

    x = jax.random.normal(kx, (B, T, C), dtype=jnp.float32)

    # Deterministic synthetic weights; PyTorch Linear weight is (H, C), we
    # store the transpose (C, H) and concatenate to (C, 3H).
    bound = 1.0 / (C ** 0.5)
    wq = jax.random.uniform(kq, (C, H), dtype=jnp.float32, minval=-bound, maxval=bound)
    wk = jax.random.uniform(kk, (C, H), dtype=jnp.float32, minval=-bound, maxval=bound)
    wv = jax.random.uniform(kv, (C, H), dtype=jnp.float32, minval=-bound, maxval=bound)
    w_qkv = jnp.concatenate([wq, wk, wv], axis=1)   # (C, 3H)

    ref = jax.block_until_ready(_reference(x, wq, wk, wv))

    # f32-operand path (tolerance accounts for the approximate EUP reciprocal).
    out_f32 = jax.block_until_ready(
        self_attention_head(x, w_qkv, compute_dtype=jnp.float32))
    assert out_f32.shape == (B, T, H), out_f32.shape
    assert jnp.allclose(out_f32, ref, atol=1e-2, rtol=1e-2), "f32 path mismatch vs reference"

    # Default bf16-MXU path (f32 accumulate / f32 softmax).
    out_bf16 = jax.block_until_ready(self_attention_head(x, w_qkv))
    assert out_bf16.shape == (B, T, H), out_bf16.shape
    assert jnp.allclose(out_bf16, ref, atol=3e-2, rtol=3e-2), "bf16 path mismatch vs reference"

    print("KERNEL_OK")
</pallas_src>

<mosaic_0001>
module attributes {stable_mosaic.version = 11 : i64} {
  func.func @_qkv_proj_kernel(%arg0: i32, %arg1: memref<16x32xf32, #tpu.memory_space<vmem>>, %arg2: memref<32x48xf32, #tpu.memory_space<vmem>>, %arg3: memref<16x16xf32, #tpu.memory_space<vmem>>, %arg4: memref<16x16xf32, #tpu.memory_space<vmem>>, %arg5: memref<16x16xf32, #tpu.memory_space<vmem>>) attributes {dimension_semantics = [#tpu.dimension_semantics<parallel>], iteration_bounds = array<i64: 1>, scalar_prefetch = 0 : i64, scratch_operands = 0 : i64, tpu.core_type = #tpu.core_type<tc>, window_params = [{transform_indices = @transform_0, window_bounds = array<i64: 16, 32>}, {pipeline_mode = #tpu.pipeline_mode<synchronous>, transform_indices = @transform_1, window_bounds = array<i64: 32, 48>}, {transform_indices = @transform_2, window_bounds = array<i64: 16, 16>}, {transform_indices = @transform_3, window_bounds = array<i64: 16, 16>}, {transform_indices = @transform_4, window_bounds = array<i64: 16, 16>}]} {
    %c0 = arith.constant 0 : index
    %c0_0 = arith.constant 0 : index
    %0 = vector.load %arg1[%c0, %c0_0] : memref<16x32xf32, #tpu.memory_space<vmem>>, vector<16x32xf32>
    %c0_1 = arith.constant 0 : index
    %c0_2 = arith.constant 0 : index
    %1 = vector.load %arg2[%c0_1, %c0_2] : memref<32x48xf32, #tpu.memory_space<vmem>>, vector<32x48xf32>
    %cst = arith.constant dense<0.000000e+00> : vector<16x48xf32>
    %2 = tpu.matmul %0, %1, %cst {dimension_numbers = #tpu.dot_dimension_numbers<[1], [0], [0], [1], [0, 0, 1, 1], [], []>} : vector<16x32xf32>, vector<32x48xf32>, vector<16x48xf32> -> vector<16x48xf32>
    %3 = vector.extract_strided_slice %2 {offsets = [0, 0], sizes = [16, 16], strides = [1, 1]} : vector<16x48xf32> to vector<16x16xf32>
    %c0_3 = arith.constant 0 : index
    %c0_4 = arith.constant 0 : index
    %4 = vector.load %arg3[%c0_3, %c0_4] : memref<16x16xf32, #tpu.memory_space<vmem>>, vector<16x16xf32>
    tpu.vector_store %arg3[%c0_3, %c0_4], %3 {strides = array<i32>} : memref<16x16xf32, #tpu.memory_space<vmem>>, vector<16x16xf32>,
    %5 = vector.extract_strided_slice %2 {offsets = [0, 16], sizes = [16, 16], strides = [1, 1]} : vector<16x48xf32> to vector<16x16xf32>
    %c0_5 = arith.constant 0 : index
    %c0_6 = arith.constant 0 : index
    %6 = vector.load %arg4[%c0_5, %c0_6] : memref<16x16xf32, #tpu.memory_space<vmem>>, vector<16x16xf32>
    tpu.vector_store %arg4[%c0_5, %c0_6], %5 {strides = array<i32>} : memref<16x16xf32, #tpu.memory_space<vmem>>, vector<16x16xf32>,
    %7 = vector.extract_strided_slice %2 {offsets = [0, 32], sizes = [16, 16], strides = [1, 1]} : vector<16x48xf32> to vector<16x16xf32>
    %c0_7 = arith.constant 0 : index
    %c0_8 = arith.constant 0 : index
    %8 = vector.load %arg5[%c0_7, %c0_8] : memref<16x16xf32, #tpu.memory_space<vmem>>, vector<16x16xf32>
    tpu.vector_store %arg5[%c0_7, %c0_8], %7 {strides = array<i32>} : memref<16x16xf32, #tpu.memory_space<vmem>>, vector<16x16xf32>,
    return
  }
  func.func @transform_0(%arg0: i32) -> (i32, i32) {
    %c0_i32 = arith.constant 0 : i32
    %c0_i32_0 = arith.constant 0 : i32
    return %arg0, %c0_i32 : i32, i32
  }
  func.func @transform_1(%arg0: i32) -> (i32, i32) {
    %c0_i32 = arith.constant 0 : i32
    %c0_i32_0 = arith.constant 0 : i32
    %c0_i32_1 = arith.constant 0 : i32
    return %c0_i32, %c0_i32_0 : i32, i32
  }
  func.func @transform_2(%arg0: i32) -> (i32, i32) {
    %c0_i32 = arith.constant 0 : i32
    %c0_i32_0 = arith.constant 0 : i32
    return %arg0, %c0_i32 : i32, i32
  }
  func.func @transform_3(%arg0: i32) -> (i32, i32) {
    %c0_i32 = arith.constant 0 : i32
    %c0_i32_0 = arith.constant 0 : i32
    return %arg0, %c0_i32 : i32, i32
  }
  func.func @transform_4(%arg0: i32) -> (i32, i32) {
    %c0_i32 = arith.constant 0 : i32
    %c0_i32_0 = arith.constant 0 : i32
    return %arg0, %c0_i32 : i32, i32
  }
}

</mosaic_0001>

<llo_original>
// kernel: tpu_custom_call.1
$region0: #{tpu_custom_call.1}
  #allocation0 [shape = 'u32[]', space=smem, size = 0x4, offset = 0x4, fixed_abs, tag = 'smem constant byte address 0x4 - core index']
  #allocation1 [shape = 'u32[144,128]{1,0:T(1,128)}', space=vmem, size = 0x12000, scoped, tag = 'internal scratch']
  %s0 = inlined_call_operand.hbm [shape: f32[16,32], index: 0, kind: input, shape index: {}]
  %s1 = inlined_call_operand.hbm [shape: f32[32,48], index: 1, kind: input, shape index: {}]
  %s2 = inlined_call_operand.hbm [shape: f32[16,16], index: 2, kind: output, shape index: {0}]
  %s3 = inlined_call_operand.hbm [shape: f32[16,16], index: 3, kind: output, shape index: {1}]
  %s4 = inlined_call_operand.hbm [shape: f32[16,16], index: 4, kind: output, shape index: {2}]
  %5 = xla_tuple %s2, %s3, %s4
  %s6 = sld [smem:[#allocation0]]
  $region42: #{tpu_custom_call.1} parent=0
    _
  %s8 = ssub.s32 1, %s6
  %s9 = scalar_select 0, %s8, %s6
  $region1: #{tpu_custom_call.1} parent=0
    #allocation2 [shape = 'u8[8192]{0}', space=vmem, size = 0x2000, scoped, tag = 'input window, operand 0, single buffered']
    #allocation3 [shape = 's32[1]{0}', space=sflag, size = 0x4, scoped, tag = 'scoped memory for tpu_custom_call.1']
    #allocation4 [shape = 's32[1]{0}', space=sflag, size = 0x4, scoped, tag = 'scoped memory for tpu_custom_call.1']
    #allocation5 [shape = 'u8[16384]{0}', space=vmem, size = 0x4000, scoped, tag = 'input window, operand 1, single buffered']
    #allocation6 [shape = 's32[1]{0}', space=sflag, size = 0x4, scoped, tag = 'scoped memory for tpu_custom_call.1']
    #allocation7 [shape = 'u8[8192]{0}', space=vmem, size = 0x2000, scoped, tag = 'output window, operand 0, single buffered']
    #allocation8 [shape = 'u8[8192]{0}', space=vmem, size = 0x2000, scoped, tag = 'output window, operand 1, single buffered']
    #allocation9 [shape = 's32[1]{0}', space=sflag, size = 0x4, scoped, tag = 'scoped memory for tpu_custom_call.1']
    #allocation10 [shape = 'u8[8192]{0}', space=vmem, size = 0x2000, scoped, tag = 'output window, operand 2, single buffered']
    %10 = vsyncpa [#allocation3], 0
    %11 = vsyncpa [#allocation6], 0
    %12 = vsyncpa [#allocation4], 0
    %13 = vsyncpa [#allocation9], 0
    // Predicated region
    $region2: #{tpu_custom_call.1} parent=1 // pred_check
      _
    $region3: #{tpu_custom_call.1} parent=1 // pred_check_branch
      %15 = sbr.rel (0) target = $region5
    $region4: #{tpu_custom_call.1} parent=1 // pred_region
      %s17 = ssub.s32 256, 256
      %18 = vsyncadd [#allocation3], %s17
      %s19 = sshll.u32 [#allocation2], 4
      %s20 = int_to_ptr.vmem [resolvable:$true] %s19
      %25 = dma.hbm_to_vmem [thread:$0]  %s0, 256, %s20, [#allocation3], 128, 128, 8
    $region5: #{tpu_custom_call.1} parent=1 // pred_fallthru
      _
    // Predicated region
    $region6: #{tpu_custom_call.1} parent=1 // pred_check
      _
    $region7: #{tpu_custom_call.1} parent=1 // pred_check_branch
      %27 = sbr.rel (0) target = $region9
    $region8: #{tpu_custom_call.1} parent=1 // pred_region
      %s29 = ssub.s32 512, 512
      %30 = vsyncadd [#allocation6], %s29
      %s31 = sshll.u32 [#allocation5], 4
      %s32 = int_to_ptr.vmem [resolvable:$true] %s31
      %37 = dma.hbm_to_vmem [thread:$0]  %s1, 512, %s32, [#allocation6], 128, 128, 8
    $region9: #{tpu_custom_call.1} parent=1 // pred_fallthru
      _
    // Predicated region
    $region10: #{tpu_custom_call.1} parent=1 // pred_check
      _
    $region11: #{tpu_custom_call.1} parent=1 // pred_check_branch
      %39 = sbr.rel (0) target = $region13
    $region12: #{tpu_custom_call.1} parent=1 // pred_region
      %40 = dma.done [#allocation3], 256
    $region13: #{tpu_custom_call.1} parent=1 // pred_fallthru
      _
    // Predicated region
    $region14: #{tpu_custom_call.1} parent=1 // pred_check
      _
    $region15: #{tpu_custom_call.1} parent=1 // pred_check_branch
      %42 = sbr.rel (0) target = $region17
    $region16: #{tpu_custom_call.1} parent=1 // pred_region
      %43 = dma.done [#allocation6], 512
    $region17: #{tpu_custom_call.1} parent=1 // pred_fallthru
      _
    %v44 = vld [vmem:[#allocation2] sm:$0xff]
    %v45 = vld [vmem:[#allocation2 + $0x8] sm:$0xff]
    %v46 = vld [vmem:[#allocation5] sm:$0xff]
    %v47 = vld [vmem:[#allocation5 + $0x8] sm:$0xff]
    %v48 = vld [vmem:[#allocation5 + $0x10] sm:$0xff]
    %v49 = vld [vmem:[#allocation5 + $0x18] sm:$0xff]
    %vm50 = vcmask 261120
    %v52 = vsel %vm50, %v44, 0
    %v55 = vsel %vm50, %v45, 0
    %57 = vmatprep.subr.mxu0 0.0
    %58 = vmatpush1.msra.mxu0 %v46
    %59 = vmatprep.subr.mxu0 0.0
    %60 = vmatpush1.msra.mxu0 %v47
    %61 = vmatprep.subr.mxu0 0.0
    %62 = vmatpush1.msra.mxu0 %v48
    %63 = vmatprep.subr.mxu0 0.0
    %64 = vmatpush1.msra.mxu0 %v49
    %65 = vmatprep.subr.mxu0 0.0
    %66 = vmatpush1.msra.mxu0 0.0
    %67 = vmatprep.subr.mxu0 0.0
    %68 = vmatpush1.msra.mxu0 0.0
    %69 = vmatprep.subr.mxu0 0.0
    %70 = vmatpush1.msra.mxu0 0.0
    %71 = vmatprep.subr.mxu0 0.0
    %72 = vmatpush1.msra.mxu0 0.0
    %73 = vmatprep.subr.mxu0 0.0
    %74 = vmatpush1.msra.mxu0 0.0
    %75 = vmatprep.subr.mxu0 0.0
    %76 = vmatpush1.msra.mxu0 0.0
    %77 = vmatprep.subr.mxu0 0.0
    %78 = vmatpush1.msra.mxu0 0.0
    %79 = vmatprep.subr.mxu0 0.0
    %80 = vmatpush1.msra.mxu0 0.0
    %81 = vmatprep.subr.mxu0 0.0
    %82 = vmatpush1.msra.mxu0 0.0
    %83 = vmatprep.subr.mxu0 0.0
    %84 = vmatpush1.msra.mxu0 0.0
    %85 = vmatprep.subr.mxu0 0.0
    %86 = vmatpush1.msra.mxu0 0.0
    %87 = vmatprep.subr.mxu0 0.0
    %88 = vmatpush1.msra.mxu0 0.0
    %89 = vmatprep.subr.mxu0 0.0
    %90 = vmatpush1.msra.mxu0 0.0
    %91 = vmatprep.subr.mxu0 0.0
    %92 = vmatpush1.msra.mxu0 0.0
    %93 = vmatprep.subr.mxu0 0.0
    %94 = vmatpush1.msra.mxu0 0.0
    %95 = vmatprep.subr.mxu0 0.0
    %96 = vmatpush1.msra.mxu0 0.0
    %97 = vmatprep.subr.mxu0 0.0
    %98 = vmatpush1.msra.mxu0 0.0
    %99 = vmatprep.subr.mxu0 0.0
    %100 = vmatpush1.msra.mxu0 0.0
    %101 = vmatprep.subr.mxu0 0.0
    %102 = vmatpush1.msra.mxu0 0.0
    %103 = vmatprep.subr.mxu0 0.0
    %104 = vmatpush1.msra.mxu0 0.0
    %105 = vmatprep.subr.mxu0 0.0
    %106 = vmatpush1.msra.mxu0 0.0
    %107 = vmatprep.subr.mxu0 0.0
    %108 = vmatpush1.msra.mxu0 0.0
    %109 = vmatprep.subr.mxu0 0.0
    %110 = vmatpush1.msra.mxu0 0.0
    %111 = vmatprep.subr.mxu0 0.0
    %112 = vmatpush1.msra.mxu0 0.0
    %113 = vmatprep.subr.mxu0 0.0
    %114 = vmatpush1.msra.mxu0 0.0
    %115 = vmatprep.subr.mxu0 0.0
    %116 = vmatpush1.msra.mxu0 0.0
    %117 = vmatprep.subr.mxu0 0.0
    %118 = vmatpush1.msra.mxu0 0.0
    %119 = vmatprep.subr.mxu0 0.0
    %120 = vmatpush1.msra.mxu0 0.0
    %121 = vmatprep.mubr.f32.mxu0 0.0
    %122 = vmatmul.mubr.f32.gmra.mrb[0].mxu0 %v52
    %v123 = vpop.f32.mrb[0].mxu0
    %v124 = vadd.f32 0.0, %v123
    %v125 = vpop.f32.mrb[0].mxu0
    %126 = vmatprep.mubr.f32.mxu0 0.0
    %127 = vmatmul.mubr.f32.gmra.mrb[0].mxu0 %v55
    %v128 = vpop.f32.mrb[0].mxu0
    %v129 = vadd.f32 0.0, %v128
    %v130 = vpop.f32.mrb[0].mxu0
    %131 = vdwg.mxu0
    %vm132 = vcmask 130048
    %133 = vst.msk [vmem:[#allocation7] sm:$0xff] %vm132, %v124
    %134 = vst.msk [vmem:[#allocation7 + $0x8] sm:$0xff] %vm132, %v129
    %137 = vrot.lane.b32.xlu0 %v124, 112
    %v138 = vpop.permute.xlu0 %137
    %139 = vrot.lane.b32.xlu0 %v129, 112
    %v140 = vpop.permute.xlu0 %139
    %143 = vst.msk [vmem:[#allocation8] sm:$0xff] %vm132, %v138
    %144 = vst.msk [vmem:[#allocation8 + $0x8] sm:$0xff] %vm132, %v140
    %145 = vrot.lane.b32.xlu0 %v124, 96
    %v146 = vpop.permute.xlu0 %145
    %147 = vrot.lane.b32.xlu0 %v129, 96
    %v148 = vpop.permute.xlu0 %147
    %151 = vst.msk [vmem:[#allocation10] sm:$0xff] %vm132, %v146
    %152 = vst.msk [vmem:[#allocation10 + $0x8] sm:$0xff] %vm132, %v148
    // Predicated region
    $region18: #{tpu_custom_call.1} parent=1 // pred_check
      _
    $region19: #{tpu_custom_call.1} parent=1 // pred_check_branch
      %154 = sbr.rel (0) target = $region21
    $region20: #{tpu_custom_call.1} parent=1 // pred_region
      %s156 = ssub.s32 256, 256
      %157 = vsyncadd [#allocation4], %s156
      %s158 = sshll.u32 [#allocation7], 4
      %s159 = int_to_ptr.vmem [resolvable:$true] %s158
      %164 = dma.vmem_to_hbm [thread:$0]  %s159, 256, %s2, [#allocation4], 128, 128, 8
    $region21: #{tpu_custom_call.1} parent=1 // pred_fallthru
      _
    // Predicated region
    $region22: #{tpu_custom_call.1} parent=1 // pred_check
      _
    $region23: #{tpu_custom_call.1} parent=1 // pred_check_branch
      %166 = sbr.rel (0) target = $region25
    $region24: #{tpu_custom_call.1} parent=1 // pred_region
      %s168 = ssub.s32 256, 256
      %169 = vsyncadd [#allocation9], %s168
      %s170 = sshll.u32 [#allocation8], 4
      %s171 = int_to_ptr.vmem [resolvable:$true] %s170
      %176 = dma.vmem_to_hbm [thread:$0]  %s171, 256, %s3, [#allocation9], 128, 128, 8
    $region25: #{tpu_custom_call.1} parent=1 // pred_fallthru
      _
    // Predicated region
    $region26: #{tpu_custom_call.1} parent=1 // pred_check
      _
    $region27: #{tpu_custom_call.1} parent=1 // pred_check_branch
      %178 = sbr.rel (0) target = $region29
    $region28: #{tpu_custom_call.1} parent=1 // pred_region
      %s180 = ssub.s32 256, 256
      %181 = vsyncadd [#allocation9], %s180
      %s182 = sshll.u32 [#allocation10], 4
      %s183 = int_to_ptr.vmem [resolvable:$true] %s182
      %188 = dma.vmem_to_hbm [thread:$0]  %s183, 256, %s4, [#allocation9], 128, 128, 8
    $region29: #{tpu_custom_call.1} parent=1 // pred_fallthru
      _
    // Predicated region
    $region30: #{tpu_custom_call.1} parent=1 // pred_check
      _
    $region31: #{tpu_custom_call.1} parent=1 // pred_check_branch
      %190 = sbr.rel (0) target = $region33
    $region32: #{tpu_custom_call.1} parent=1 // pred_region
      %191 = dma.done [#allocation4], 256
    $region33: #{tpu_custom_call.1} parent=1 // pred_fallthru
      _
    // Predicated region
    $region34: #{tpu_custom_call.1} parent=1 // pred_check
      _
    $region35: #{tpu_custom_call.1} parent=1 // pred_check_branch
      %193 = sbr.rel (0) target = $region37
    $region36: #{tpu_custom_call.1} parent=1 // pred_region
      %194 = dma.done [#allocation9], 256
    $region37: #{tpu_custom_call.1} parent=1 // pred_fallthru
      _
    // Predicated region
    $region38: #{tpu_custom_call.1} parent=1 // pred_check
      _
    $region39: #{tpu_custom_call.1} parent=1 // pred_check_branch
      %196 = sbr.rel (0) target = $region41
    $region40: #{tpu_custom_call.1} parent=1 // pred_region
      %197 = dma.done [#allocation9], 256
    $region41: #{tpu_custom_call.1} parent=1 // pred_fallthru
      _
    %198 = vsyncpa [#allocation3], 1
    %199 = vsyncpa [#allocation6], 1
    %200 = vsyncpa [#allocation4], 1
    %201 = vsyncpa [#allocation9], 1

</llo_original>
